<compile_context>
chip_gen: v7x
topology: tpu7x:2x2x1
jax: 0.10.0
libtpu: 0.0.40
codegen_flags: <defaults>
</compile_context>

<pallas_src>
import jax
import jax.numpy as jnp
import numpy as np
from jax.experimental import pallas as pl
from jax.experimental.pallas import tpu as pltpu

SMOOTH = 1e-4


def _round_up(x, m):
    return ((x + m - 1) // m) * m


def _soft_dice_partial_kernel(x_ref, t_ref, out_ref):
    # x_ref:   (1, C, TILE_R, 128) logits (HBM dtype, upcast in vregs)
    # t_ref:   (1, 1, TILE_R, 128) int8 labels; -1 marks padded pixels
    # out_ref: (1, 1, 2*C, 128) f32 lane-dense partial sums:
    #          rows [0, C)   -> per-class partial sum of p * onehot   (inter)
    #          rows [C, 2*C) -> per-class partial sum of p + onehot   (union)
    C = x_ref.shape[1]

    t = t_ref[0, 0].astype(jnp.int32)             # one cheap in-vreg upcast
    valid = (t >= 0).astype(jnp.float32)          # 0 on padded pixels

    # Channel softmax with spatial pixels on (sublane, lane); the channel loop
    # is statically unrolled (C is small).  x is re-read from VMEM in each
    # pass instead of holding C live f32 copies.
    m = x_ref[0, 0].astype(jnp.float32)
    for c in range(1, C):
        m = jnp.maximum(m, x_ref[0, c].astype(jnp.float32))
    es = [jnp.exp(x_ref[0, c].astype(jnp.float32) - m) for c in range(C)]
    se = es[0]
    for c in range(1, C):
        se = se + es[c]

    # EUP approx reciprocal + one VPU Newton step; fold in the pad mask so
    # padded pixels contribute nothing to the probability sums (se >= 1 always).
    inv = pl.reciprocal(se, approx=True)
    inv = inv * (2.0 - se * inv)
    inv = inv * valid

    inter_rows = []
    union_rows = []
    for c in range(C):
        p_c = es[c] * inv                                    # masked softmax prob
        hit = t == c                                         # one-hot mask
        inter_t = jnp.where(hit, p_c, 0.0)                   # p * onehot
        union_t = p_c + jnp.where(hit, 1.0, 0.0)             # p + onehot
        # Fold (TILE_R, 128) -> (8, 128) with pure VPU adds, then one cheap
        # sublane reduce to a lane-dense (1, 128) row.
        inter_f = inter_t.reshape(-1, 8, 128).sum(axis=0)
        union_f = union_t.reshape(-1, 8, 128).sum(axis=0)
        inter_rows.append(inter_f.sum(axis=0, keepdims=True))
        union_rows.append(union_f.sum(axis=0, keepdims=True))

    out = jnp.concatenate(inter_rows + union_rows, axis=0)   # (2C, 128)
    out_ref[...] = out.reshape(1, 1, 2 * C, 128)


def soft_dice_loss(logits, target, n_classes, tile_rows=512):
    """logits: (B, C, H, W) float (f32/bf16); target: (B, 1, H, W) int labels in [0, C)."""
    B, C, H, W = logits.shape
    assert C == n_classes
    assert n_classes <= 127, "labels are shipped as int8"
    N = H * W

    # Spatial pixels laid out as (rows, 128) lanes; tile rows in multiples of
    # 32 so the int8 label blocks stay aligned to their native (32,128) tiling.
    tile_rows = max(32, _round_up(tile_rows, 32))
    rows = pl.cdiv(N, 128)
    tile_r = min(tile_rows, _round_up(rows, 32))
    rows_pad = _round_up(rows, tile_r)
    n_pad = rows_pad * 128
    n_tiles = rows_pad // tile_r

    # Logits stay in their HBM dtype (upcast happens in-kernel); labels travel
    # as int8 (1 byte/pixel of DMA instead of 4).  Padded pixels get label -1.
    x = logits.reshape(B, C, N)
    t = target.reshape(B, N).astype(jnp.int8)
    if n_pad != N:
        x = jnp.pad(x, ((0, 0), (0, 0), (0, n_pad - N)))
        t = jnp.pad(t, ((0, 0), (0, n_pad - N)), constant_values=-1)
    x = x.reshape(B, C, rows_pad, 128)
    t = t.reshape(B, 1, rows_pad, 128)

    elem = x.dtype.itemsize
    cost = pl.CostEstimate(
        flops=10 * B * C * n_pad,
        transcendentals=B * C * n_pad + B * n_pad,
        bytes_accessed=(B * C * n_pad * elem            # logits
                        + B * n_pad                      # int8 labels
                        + B * n_tiles * 2 * C * 128 * 4  # partial-sum output
                        ),
    )

    partial = pl.pallas_call(
        _soft_dice_partial_kernel,
        out_shape=jax.ShapeDtypeStruct((B, n_tiles, 2 * C, 128), jnp.float32),
        grid_spec=pltpu.PrefetchScalarGridSpec(
            num_scalar_prefetch=0,
            grid=(B, n_tiles),
            in_specs=[
                pl.BlockSpec((1, C, tile_r, 128), lambda b, s: (b, 0, s, 0)),
                pl.BlockSpec((1, 1, tile_r, 128), lambda b, s: (b, 0, s, 0)),
            ],
            out_specs=pl.BlockSpec((1, 1, 2 * C, 128), lambda b, s: (b, s, 0, 0)),
        ),
        compiler_params=pltpu.CompilerParams(
            dimension_semantics=("parallel", "parallel"),
            vmem_limit_bytes=32 * 1024 * 1024),
        cost_estimate=cost,
    )(x, t)

    # Tiny final reduce over O(B * n_tiles * C) scalars stays in XLA.
    sums = jnp.sum(partial, axis=(1, 3))                 # (B, 2C)
    inter = sums[:, :C] + SMOOTH
    union = sums[:, C:] + SMOOTH
    score = jnp.sum(2.0 * inter / union)
    return 1.0 - score / (float(B) * float(n_classes))


def _reference_loss(logits, target, n_classes):
    """Pure-JAX reference matching the PyTorch module exactly."""
    B, C, H, W = logits.shape
    p = jax.nn.softmax(logits.astype(jnp.float32), axis=1).reshape(B, C, -1)
    t = jax.nn.one_hot(target.reshape(B, -1), n_classes, axis=1,
                       dtype=jnp.float32)                # (B, C, N)
    inter = jnp.sum(p * t, axis=2) + SMOOTH
    union = jnp.sum(p, axis=2) + jnp.sum(t, axis=2) + SMOOTH
    score = jnp.sum(2.0 * inter / union)
    return 1.0 - score / (float(B) * float(n_classes))


if __name__ == "__main__":
    n_classes = 4
    B, H, W = 2, 16, 16

    key = jax.random.PRNGKey(0)
    k1, k2 = jax.random.split(key)
    logits = jax.random.normal(k1, (B, n_classes, H, W), dtype=jnp.float32)
    target = jax.random.randint(k2, (B, 1, H, W), 0, n_classes, dtype=jnp.int32)

    loss = soft_dice_loss(logits, target, n_classes)
    loss = jax.block_until_ready(loss)

    ref = _reference_loss(logits, target, n_classes)
    np.testing.assert_allclose(np.asarray(loss), np.asarray(ref),
                               rtol=1e-5, atol=1e-6)
    print("KERNEL_OK")
</pallas_src>

<mosaic_0001>
module attributes {stable_mosaic.version = 11 : i64} {
  func.func @_soft_dice_partial_kernel(%arg0: i32, %arg1: i32, %arg2: memref<1x4x32x128xf32, #tpu.memory_space<vmem>>, %arg3: memref<1x1x32x128xi8, #tpu.memory_space<vmem>>, %arg4: memref<1x1x8x128xf32, #tpu.memory_space<vmem>>) attributes {dimension_semantics = [#tpu.dimension_semantics<parallel>, #tpu.dimension_semantics<parallel>], iteration_bounds = array<i64: 2, 1>, scalar_prefetch = 0 : i64, scratch_operands = 0 : i64, tpu.core_type = #tpu.core_type<tc>, window_params = [{transform_indices = @transform_0, window_bounds = array<i64: 1, 4, 32, 128>}, {transform_indices = @transform_1, window_bounds = array<i64: 1, 1, 32, 128>}, {transform_indices = @transform_2, window_bounds = array<i64: 1, 1, 8, 128>}]} {
    %c0 = arith.constant 0 : index
    %c0_0 = arith.constant 0 : index
    %c0_1 = arith.constant 0 : index
    %c0_2 = arith.constant 0 : index
    %0 = vector.load %arg3[%c0, %c0_0, %c0_1, %c0_2] : memref<1x1x32x128xi8, #tpu.memory_space<vmem>>, vector<1x1x32x128xi8>
    %1 = vector.shape_cast %0 : vector<1x1x32x128xi8> to vector<32x128xi8>
    %2 = arith.extsi %1 : vector<32x128xi8> to vector<32x128xi32>
    %c0_i32 = arith.constant 0 : i32
    %3 = vector.broadcast %c0_i32 : i32 to vector<32x128xi32>
    %4 = arith.cmpi sge, %2, %3 : vector<32x128xi32>
    %5 = arith.extui %4 : vector<32x128xi1> to vector<32x128xi32>
    %6 = arith.sitofp %5 : vector<32x128xi32> to vector<32x128xf32>
    %c0_3 = arith.constant 0 : index
    %c0_4 = arith.constant 0 : index
    %c0_5 = arith.constant 0 : index
    %c0_6 = arith.constant 0 : index
    %7 = vector.load %arg2[%c0_3, %c0_4, %c0_5, %c0_6] : memref<1x4x32x128xf32, #tpu.memory_space<vmem>>, vector<1x1x32x128xf32>
    %8 = vector.shape_cast %7 : vector<1x1x32x128xf32> to vector<32x128xf32>
    %c0_7 = arith.constant 0 : index
    %c1 = arith.constant 1 : index
    %c0_8 = arith.constant 0 : index
    %c0_9 = arith.constant 0 : index
    %9 = vector.load %arg2[%c0_7, %c1, %c0_8, %c0_9] : memref<1x4x32x128xf32, #tpu.memory_space<vmem>>, vector<1x1x32x128xf32>
    %10 = vector.shape_cast %9 : vector<1x1x32x128xf32> to vector<32x128xf32>
    %11 = arith.maximumf %8, %10 : vector<32x128xf32>
    %c0_10 = arith.constant 0 : index
    %c2 = arith.constant 2 : index
    %c0_11 = arith.constant 0 : index
    %c0_12 = arith.constant 0 : index
    %12 = vector.load %arg2[%c0_10, %c2, %c0_11, %c0_12] : memref<1x4x32x128xf32, #tpu.memory_space<vmem>>, vector<1x1x32x128xf32>
    %13 = vector.shape_cast %12 : vector<1x1x32x128xf32> to vector<32x128xf32>
    %14 = arith.maximumf %11, %13 : vector<32x128xf32>
    %c0_13 = arith.constant 0 : index
    %c3 = arith.constant 3 : index
    %c0_14 = arith.constant 0 : index
    %c0_15 = arith.constant 0 : index
    %15 = vector.load %arg2[%c0_13, %c3, %c0_14, %c0_15] : memref<1x4x32x128xf32, #tpu.memory_space<vmem>>, vector<1x1x32x128xf32>
    %16 = vector.shape_cast %15 : vector<1x1x32x128xf32> to vector<32x128xf32>
    %17 = arith.maximumf %14, %16 : vector<32x128xf32>
    %c0_16 = arith.constant 0 : index
    %c0_17 = arith.constant 0 : index
    %c0_18 = arith.constant 0 : index
    %c0_19 = arith.constant 0 : index
    %18 = vector.load %arg2[%c0_16, %c0_17, %c0_18, %c0_19] : memref<1x4x32x128xf32, #tpu.memory_space<vmem>>, vector<1x1x32x128xf32>
    %19 = vector.shape_cast %18 : vector<1x1x32x128xf32> to vector<32x128xf32>
    %20 = arith.subf %19, %17 : vector<32x128xf32>
    %21 = math.exp %20 : vector<32x128xf32>
    %c0_20 = arith.constant 0 : index
    %c1_21 = arith.constant 1 : index
    %c0_22 = arith.constant 0 : index
    %c0_23 = arith.constant 0 : index
    %22 = vector.load %arg2[%c0_20, %c1_21, %c0_22, %c0_23] : memref<1x4x32x128xf32, #tpu.memory_space<vmem>>, vector<1x1x32x128xf32>
    %23 = vector.shape_cast %22 : vector<1x1x32x128xf32> to vector<32x128xf32>
    %24 = arith.subf %23, %17 : vector<32x128xf32>
    %25 = math.exp %24 : vector<32x128xf32>
    %c0_24 = arith.constant 0 : index
    %c2_25 = arith.constant 2 : index
    %c0_26 = arith.constant 0 : index
    %c0_27 = arith.constant 0 : index
    %26 = vector.load %arg2[%c0_24, %c2_25, %c0_26, %c0_27] : memref<1x4x32x128xf32, #tpu.memory_space<vmem>>, vector<1x1x32x128xf32>
    %27 = vector.shape_cast %26 : vector<1x1x32x128xf32> to vector<32x128xf32>
    %28 = arith.subf %27, %17 : vector<32x128xf32>
    %29 = math.exp %28 : vector<32x128xf32>
    %c0_28 = arith.constant 0 : index
    %c3_29 = arith.constant 3 : index
    %c0_30 = arith.constant 0 : index
    %c0_31 = arith.constant 0 : index
    %30 = vector.load %arg2[%c0_28, %c3_29, %c0_30, %c0_31] : memref<1x4x32x128xf32, #tpu.memory_space<vmem>>, vector<1x1x32x128xf32>
    %31 = vector.shape_cast %30 : vector<1x1x32x128xf32> to vector<32x128xf32>
    %32 = arith.subf %31, %17 : vector<32x128xf32>
    %33 = math.exp %32 : vector<32x128xf32>
    %34 = arith.addf %21, %25 : vector<32x128xf32>
    %35 = arith.addf %34, %29 : vector<32x128xf32>
    %36 = arith.addf %35, %33 : vector<32x128xf32>
    %37 = tpu.reciprocal %36 {approx = true} : vector<32x128xf32> -> vector<32x128xf32>
    %38 = arith.mulf %36, %37 : vector<32x128xf32>
    %cst = arith.constant 2.000000e+00 : f32
    %39 = vector.broadcast %cst : f32 to vector<32x128xf32>
    %40 = arith.subf %39, %38 : vector<32x128xf32>
    %41 = arith.mulf %37, %40 : vector<32x128xf32>
    %42 = arith.mulf %41, %6 : vector<32x128xf32>
    %43 = arith.mulf %21, %42 : vector<32x128xf32>
    %c0_i32_32 = arith.constant 0 : i32
    %44 = vector.broadcast %c0_i32_32 : i32 to vector<32x128xi32>
    %45 = arith.cmpi eq, %2, %44 : vector<32x128xi32>
    %cst_33 = arith.constant 0.000000e+00 : f32
    %46 = vector.broadcast %cst_33 : f32 to vector<32x128xf32>
    %47 = arith.select %45, %43, %46 : vector<32x128xi1>, vector<32x128xf32>
    %cst_34 = arith.constant 1.000000e+00 : f32
    %cst_35 = arith.constant 0.000000e+00 : f32
    %48 = vector.broadcast %cst_34 : f32 to vector<32x128xf32>
    %49 = vector.broadcast %cst_35 : f32 to vector<32x128xf32>
    %50 = arith.select %45, %48, %49 : vector<32x128xi1>, vector<32x128xf32>
    %51 = arith.addf %43, %50 : vector<32x128xf32>
    %52 = vector.shape_cast %47 : vector<32x128xf32> to vector<4x8x128xf32>
    %cst_36 = arith.constant dense<0.000000e+00> : vector<8x128xf32>
    %53 = vector.multi_reduction <add>, %52, %cst_36 [0] : vector<4x8x128xf32> to vector<8x128xf32>
    %54 = vector.shape_cast %51 : vector<32x128xf32> to vector<4x8x128xf32>
    %cst_37 = arith.constant dense<0.000000e+00> : vector<8x128xf32>
    %55 = vector.multi_reduction <add>, %54, %cst_37 [0] : vector<4x8x128xf32> to vector<8x128xf32>
    %cst_38 = arith.constant dense<0.000000e+00> : vector<128xf32>
    %56 = vector.multi_reduction <add>, %53, %cst_38 [0] : vector<8x128xf32> to vector<128xf32>
    %57 = vector.shape_cast %56 : vector<128xf32> to vector<1x128xf32>
    %cst_39 = arith.constant dense<0.000000e+00> : vector<128xf32>
    %58 = vector.multi_reduction <add>, %55, %cst_39 [0] : vector<8x128xf32> to vector<128xf32>
    %59 = vector.shape_cast %58 : vector<128xf32> to vector<1x128xf32>
    %60 = arith.mulf %25, %42 : vector<32x128xf32>
    %c1_i32 = arith.constant 1 : i32
    %61 = vector.broadcast %c1_i32 : i32 to vector<32x128xi32>
    %62 = arith.cmpi eq, %2, %61 : vector<32x128xi32>
    %cst_40 = arith.constant 0.000000e+00 : f32
    %63 = vector.broadcast %cst_40 : f32 to vector<32x128xf32>
    %64 = arith.select %62, %60, %63 : vector<32x128xi1>, vector<32x128xf32>
    %cst_41 = arith.constant 1.000000e+00 : f32
    %cst_42 = arith.constant 0.000000e+00 : f32
    %65 = vector.broadcast %cst_41 : f32 to vector<32x128xf32>
    %66 = vector.broadcast %cst_42 : f32 to vector<32x128xf32>
    %67 = arith.select %62, %65, %66 : vector<32x128xi1>, vector<32x128xf32>
    %68 = arith.addf %60, %67 : vector<32x128xf32>
    %69 = vector.shape_cast %64 : vector<32x128xf32> to vector<4x8x128xf32>
    %cst_43 = arith.constant dense<0.000000e+00> : vector<8x128xf32>
    %70 = vector.multi_reduction <add>, %69, %cst_43 [0] : vector<4x8x128xf32> to vector<8x128xf32>
    %71 = vector.shape_cast %68 : vector<32x128xf32> to vector<4x8x128xf32>
    %cst_44 = arith.constant dense<0.000000e+00> : vector<8x128xf32>
    %72 = vector.multi_reduction <add>, %71, %cst_44 [0] : vector<4x8x128xf32> to vector<8x128xf32>
    %cst_45 = arith.constant dense<0.000000e+00> : vector<128xf32>
    %73 = vector.multi_reduction <add>, %70, %cst_45 [0] : vector<8x128xf32> to vector<128xf32>
    %74 = vector.shape_cast %73 : vector<128xf32> to vector<1x128xf32>
    %cst_46 = arith.constant dense<0.000000e+00> : vector<128xf32>
    %75 = vector.multi_reduction <add>, %72, %cst_46 [0] : vector<8x128xf32> to vector<128xf32>
    %76 = vector.shape_cast %75 : vector<128xf32> to vector<1x128xf32>
    %77 = arith.mulf %29, %42 : vector<32x128xf32>
    %c2_i32 = arith.constant 2 : i32
    %78 = vector.broadcast %c2_i32 : i32 to vector<32x128xi32>
    %79 = arith.cmpi eq, %2, %78 : vector<32x128xi32>
    %cst_47 = arith.constant 0.000000e+00 : f32
    %80 = vector.broadcast %cst_47 : f32 to vector<32x128xf32>
    %81 = arith.select %79, %77, %80 : vector<32x128xi1>, vector<32x128xf32>
    %cst_48 = arith.constant 1.000000e+00 : f32
    %cst_49 = arith.constant 0.000000e+00 : f32
    %82 = vector.broadcast %cst_48 : f32 to vector<32x128xf32>
    %83 = vector.broadcast %cst_49 : f32 to vector<32x128xf32>
    %84 = arith.select %79, %82, %83 : vector<32x128xi1>, vector<32x128xf32>
    %85 = arith.addf %77, %84 : vector<32x128xf32>
    %86 = vector.shape_cast %81 : vector<32x128xf32> to vector<4x8x128xf32>
    %cst_50 = arith.constant dense<0.000000e+00> : vector<8x128xf32>
    %87 = vector.multi_reduction <add>, %86, %cst_50 [0] : vector<4x8x128xf32> to vector<8x128xf32>
    %88 = vector.shape_cast %85 : vector<32x128xf32> to vector<4x8x128xf32>
    %cst_51 = arith.constant dense<0.000000e+00> : vector<8x128xf32>
    %89 = vector.multi_reduction <add>, %88, %cst_51 [0] : vector<4x8x128xf32> to vector<8x128xf32>
    %cst_52 = arith.constant dense<0.000000e+00> : vector<128xf32>
    %90 = vector.multi_reduction <add>, %87, %cst_52 [0] : vector<8x128xf32> to vector<128xf32>
    %91 = vector.shape_cast %90 : vector<128xf32> to vector<1x128xf32>
    %cst_53 = arith.constant dense<0.000000e+00> : vector<128xf32>
    %92 = vector.multi_reduction <add>, %89, %cst_53 [0] : vector<8x128xf32> to vector<128xf32>
    %93 = vector.shape_cast %92 : vector<128xf32> to vector<1x128xf32>
    %94 = arith.mulf %33, %42 : vector<32x128xf32>
    %c3_i32 = arith.constant 3 : i32
    %95 = vector.broadcast %c3_i32 : i32 to vector<32x128xi32>
    %96 = arith.cmpi eq, %2, %95 : vector<32x128xi32>
    %cst_54 = arith.constant 0.000000e+00 : f32
    %97 = vector.broadcast %cst_54 : f32 to vector<32x128xf32>
    %98 = arith.select %96, %94, %97 : vector<32x128xi1>, vector<32x128xf32>
    %cst_55 = arith.constant 1.000000e+00 : f32
    %cst_56 = arith.constant 0.000000e+00 : f32
    %99 = vector.broadcast %cst_55 : f32 to vector<32x128xf32>
    %100 = vector.broadcast %cst_56 : f32 to vector<32x128xf32>
    %101 = arith.select %96, %99, %100 : vector<32x128xi1>, vector<32x128xf32>
    %102 = arith.addf %94, %101 : vector<32x128xf32>
    %103 = vector.shape_cast %98 : vector<32x128xf32> to vector<4x8x128xf32>
    %cst_57 = arith.constant dense<0.000000e+00> : vector<8x128xf32>
    %104 = vector.multi_reduction <add>, %103, %cst_57 [0] : vector<4x8x128xf32> to vector<8x128xf32>
    %105 = vector.shape_cast %102 : vector<32x128xf32> to vector<4x8x128xf32>
    %cst_58 = arith.constant dense<0.000000e+00> : vector<8x128xf32>
    %106 = vector.multi_reduction <add>, %105, %cst_58 [0] : vector<4x8x128xf32> to vector<8x128xf32>
    %cst_59 = arith.constant dense<0.000000e+00> : vector<128xf32>
    %107 = vector.multi_reduction <add>, %104, %cst_59 [0] : vector<8x128xf32> to vector<128xf32>
    %108 = vector.shape_cast %107 : vector<128xf32> to vector<1x128xf32>
    %cst_60 = arith.constant dense<0.000000e+00> : vector<128xf32>
    %109 = vector.multi_reduction <add>, %106, %cst_60 [0] : vector<8x128xf32> to vector<128xf32>
    %110 = vector.shape_cast %109 : vector<128xf32> to vector<1x128xf32>
    %111 = tpu.concatenate %57, %74, %91, %108, %59, %76, %93, %110 in 0 : vector<1x128xf32>, vector<1x128xf32>, vector<1x128xf32>, vector<1x128xf32>, vector<1x128xf32>, vector<1x128xf32>, vector<1x128xf32>, vector<1x128xf32> -> vector<8x128xf32>
    %112 = vector.shape_cast %111 : vector<8x128xf32> to vector<1x1x8x128xf32>
    %c0_61 = arith.constant 0 : index
    %c0_62 = arith.constant 0 : index
    %c0_63 = arith.constant 0 : index
    %c0_64 = arith.constant 0 : index
    %113 = vector.load %arg4[%c0_61, %c0_62, %c0_63, %c0_64] : memref<1x1x8x128xf32, #tpu.memory_space<vmem>>, vector<1x1x8x128xf32>
    tpu.vector_store %arg4[%c0_61, %c0_62, %c0_63, %c0_64], %112 {strides = array<i32>} : memref<1x1x8x128xf32, #tpu.memory_space<vmem>>, vector<1x1x8x128xf32>,
    return
  }
  func.func @transform_0(%arg0: i32, %arg1: i32) -> (i32, i32, i32, i32) {
    %c0_i32 = arith.constant 0 : i32
    %c0_i32_0 = arith.constant 0 : i32
    %c0_i32_1 = arith.constant 0 : i32
    return %arg0, %c0_i32, %arg1, %c0_i32_0 : i32, i32, i32, i32
  }
  func.func @transform_1(%arg0: i32, %arg1: i32) -> (i32, i32, i32, i32) {
    %c0_i32 = arith.constant 0 : i32
    %c0_i32_0 = arith.constant 0 : i32
    %c0_i32_1 = arith.constant 0 : i32
    return %arg0, %c0_i32, %arg1, %c0_i32_0 : i32, i32, i32, i32
  }
  func.func @transform_2(%arg0: i32, %arg1: i32) -> (i32, i32, i32, i32) {
    %c0_i32 = arith.constant 0 : i32
    %c0_i32_0 = arith.constant 0 : i32
    %c0_i32_1 = arith.constant 0 : i32
    return %arg0, %arg1, %c0_i32, %c0_i32_0 : i32, i32, i32, i32
  }
}

</mosaic_0001>

<llo_original>
// kernel: tpu_custom_call.1
$region0: #{tpu_custom_call.1}
  #allocation0 [shape = 'u32[]', space=smem, size = 0x4, offset = 0x4, fixed_abs, tag = 'smem constant byte address 0x4 - core index']
  #allocation1 [shape = 'u32[144,128]{1,0:T(1,128)}', space=vmem, size = 0x12000, scoped, tag = 'internal scratch']
  %s0 = inlined_call_operand.hbm [shape: f32[2,4,32,128], index: 0, kind: input, shape index: {}]
  %s1 = inlined_call_operand.hbm [shape: s8[2,1,32,128], index: 1, kind: input, shape index: {}]
  %s2 = inlined_call_operand.hbm [shape: f32[2,1,8,128], index: 2, kind: output, shape index: {}]
  %s3 = sld [smem:[#allocation0]]
  $region49: #{tpu_custom_call.1} parent=0
    _
  %s5 = ssub.s32 1, %s3
  %s6 = scalar_select 0, %s5, %s3
  $region1: #{tpu_custom_call.1} parent=0
    #allocation2 [shape = 'u8[131072]{0}', space=vmem, size = 0x20000, scoped, tag = 'input window, operand 0']
    #allocation3 [shape = 's32[2]{0}', space=sflag, size = 0x8, scoped, tag = 'scoped memory for tpu_custom_call.1']
    #allocation4 [shape = 's32[2]{0}', space=sflag, size = 0x8, scoped, tag = 'scoped memory for tpu_custom_call.1']
    #allocation5 [shape = 'u8[8192]{0}', space=vmem, size = 0x2000, scoped, tag = 'input window, operand 1']
    #allocation6 [shape = 's32[2]{0}', space=sflag, size = 0x8, scoped, tag = 'scoped memory for tpu_custom_call.1']
    #allocation7 [shape = 'u8[8192]{0}', space=vmem, size = 0x2000, scoped, tag = 'output window, operand 0']
    %7 = vsyncpa [#allocation3], 0
    %s8 = scalar_lea.sflag [#allocation3], 1
    %9 = vsyncpa %s8, 0
    %10 = vsyncpa [#allocation6], 0
    %s11 = scalar_lea.sflag [#allocation6], 1
    %12 = vsyncpa %s11, 0
    %13 = vsyncpa [#allocation4], 0
    %s14 = scalar_lea.sflag [#allocation4], 1
    %15 = vsyncpa %s14, 0
    loop: start=0, step=1, limit=4
    $region2: #{tpu_custom_call.1} parent=1 // loop_pre_header
      _
    $region3: #{tpu_custom_call.1} parent=1 // loop_header
      %s17 = sphi 0, %s21
      %p18 = scmp.ge.s32.totalorder %s17, 4
      %s24 = sphi 0, %s36
      %s25 = sphi 0, %s32
      %s26 = sphi 0, %s24
      %s27 = sphi 0, %s25
      %s28 = sphi 0, %s26
      %s29 = sphi 0, %s27
      %s41 = sphi 0, %s43
      %s44 = sphi 0, %s41
      %s45 = sphi 0, %s44
      %s61 = sphi 0, %s45
      %s69 = sphi 0, %s71
      %s72 = sphi 0, %s69
      %s73 = sphi 0, %s72
      %s89 = sphi 0, %s73
      %s97 = sphi 0, %s99
      %s100 = sphi 0, %s97
      %s101 = sphi 0, %s100
      %s117 = sphi 0, %s101
    $region4: #{tpu_custom_call.1} parent=1 // loop_header_branch
      %20 = sbr.rel (%p18) target = $region8
    $region5: #{tpu_custom_call.1} parent=1 // loop_body
      %s22 = ssub.s32 %s17, 1
      %s23 = ssub.s32 %s17, 2
      %s30 = sadd.s32 1, %s25
      %p31 = scmp.ge.s32.totalorder %s30, 1
      %s32 = scalar_select %p31, 0, %s30
      %s33 = sadd.s32 1, %s24
      %s34 = scalar_select %p31, %s33, %s24
      %p35 = scmp.ge.s32.totalorder %s34, 2
      %s36 = scalar_select %p35, 0, %s34
      %s37 = ssub.s32 %s24, %s36
      %s38 = ssub.s32 %s25, %s32
      %s39 = sor.u32 %s37, %s38
      %p40 = scmp.eq.s32.totalorder %s39, 0
      %s42 = sadd.s32 %s41, 1
      %s43 = scalar_select %p40, %s41, %s42
      %p46 = pneg %p40
      %p47 = scmp.eq.s32.totalorder %s17, 1
      %p48 = por %p46, %p47
      %p49 = scmp.ne.s32.totalorder %s41, %s44
      %p50 = scmp.eq.s32.totalorder %s17, 0
      %p51 = por %p49, %p50
      %p52 = scmp.ne.s32.totalorder %s41, %s44
      %p53 = scmp.eq.s32.totalorder %s22, 1
      %p54 = por %p52, %p53
      %p55 = scmp.ne.s32.totalorder %s44, %s45
      %p56 = scmp.eq.s32.totalorder %s22, 0
      %p57 = por %p55, %p56
      %p58 = scmp.ne.s32.totalorder %s44, %s45
      %p59 = scmp.eq.s32.totalorder %s23, 1
      %p60 = por %p58, %p59
      %p62 = scmp.ne.s32.totalorder %s45, %s61
      %p63 = scmp.eq.s32.totalorder %s23, 0
      %p64 = por %p62, %p63
      %s65 = ssub.s32 %s24, %s36
      %s66 = ssub.s32 %s25, %s32
      %s67 = sor.u32 %s65, %s66
      %p68 = scmp.eq.s32.totalorder %s67, 0
      %s70 = sadd.s32 %s69, 1
      %s71 = scalar_select %p68, %s69, %s70
      %p74 = pneg %p68
      %p75 = scmp.eq.s32.totalorder %s17, 1
      %p76 = por %p74, %p75
      %p77 = scmp.ne.s32.totalorder %s69, %s72
      %p78 = scmp.eq.s32.totalorder %s17, 0
      %p79 = por %p77, %p78
      %p80 = scmp.ne.s32.totalorder %s69, %s72
      %p81 = scmp.eq.s32.totalorder %s22, 1
      %p82 = por %p80, %p81
      %p83 = scmp.ne.s32.totalorder %s72, %s73
      %p84 = scmp.eq.s32.totalorder %s22, 0
      %p85 = por %p83, %p84
      %p86 = scmp.ne.s32.totalorder %s72, %s73
      %p87 = scmp.eq.s32.totalorder %s23, 1
      %p88 = por %p86, %p87
      %p90 = scmp.ne.s32.totalorder %s73, %s89
      %p91 = scmp.eq.s32.totalorder %s23, 0
      %p92 = por %p90, %p91
      %s93 = ssub.s32 %s24, %s36
      %s94 = ssub.s32 %s25, %s32
      %s95 = sor.u32 %s93, %s94
      %p96 = scmp.eq.s32.totalorder %s95, 0
      %s98 = sadd.s32 %s97, 1
      %s99 = scalar_select %p96, %s97, %s98
      %p102 = pneg %p96
      %p103 = scmp.eq.s32.totalorder %s17, 1
      %p104 = por %p102, %p103
      %p105 = scmp.ne.s32.totalorder %s97, %s100
      %p106 = scmp.eq.s32.totalorder %s17, 0
      %p107 = por %p105, %p106
      %p108 = scmp.ne.s32.totalorder %s97, %s100
      %p109 = scmp.eq.s32.totalorder %s22, 1
      %p110 = por %p108, %p109
      %p111 = scmp.ne.s32.totalorder %s100, %s101
      %p112 = scmp.eq.s32.totalorder %s22, 0
      %p113 = por %p111, %p112
      %p114 = scmp.ne.s32.totalorder %s100, %s101
      %p115 = scmp.eq.s32.totalorder %s23, 1
      %p116 = por %p114, %p115
      %p118 = scmp.ne.s32.totalorder %s101, %s117
      %p119 = scmp.eq.s32.totalorder %s23, 0
      %p120 = por %p118, %p119
      %p121 = scmp.le.s32.totalorder 1, %s17
      %p122 = scmp.lt.s32.totalorder %s17, 3
      %p123 = pnand %p121, %p122
      %p124 = pneg %p123
      // Predicated region
      $region9: #{tpu_custom_call.1} parent=5 // pred_check
        _
      $region10: #{tpu_custom_call.1} parent=5 // pred_check_branch
        %126 = sbr.rel (%p123) target = $region12
      $region11: #{tpu_custom_call.1} parent=5 // pred_region
        %s127 = ssub.s32 %s17, 1
      $region12: #{tpu_custom_call.1} parent=5 // pred_fallthru
        _
      %p128 = scmp.lt.s32.totalorder %s17, 2
      // Predicated region
      $region13: #{tpu_custom_call.1} parent=5 // pred_check
        %p129 = pneg %p128
      $region14: #{tpu_custom_call.1} parent=5 // pred_check_branch
        %131 = sbr.rel (%p129) target = $region16
      $region15: #{tpu_custom_call.1} parent=5 // pred_region
        // Predicated region
        $region17: #{tpu_custom_call.1} parent=15 // pred_check
          %p132 = pneg %p51
        $region18: #{tpu_custom_call.1} parent=15 // pred_check_branch
          %134 = sbr.rel (%p132) target = $region20
        $region19: #{tpu_custom_call.1} parent=15 // pred_region
          %s135 = sand.u32 %s41, 1
          %s136 = scalar_lea.sflag [#allocation3], %s135
          %s137 = sand.u32 %s41, 1
          %s138 = smul.addr %s137, 128
          %s139 = scalar_lea.vmem [#allocation2], %s138
          %s140 = smul.u32 4, %s25
          %s142 = ssub.s32 2048, 2048
          %143 = vsyncadd %s136, %s142
          %s144 = smul.addr %s24, 16
          %s145 = sadd.s32 %s140, %s144
          %s146 = smul.addr %s145, 128
          %s147 = scalar_lea.hbm %s0, %s146
          %s148 = sshll.u32 %s139, 4
          %s149 = int_to_ptr.vmem [resolvable:$true] %s148
          %154 = dma.hbm_to_vmem [thread:$0]  %s147, 2048, %s149, %s136, 128, 128, 8
        $region20: #{tpu_custom_call.1} parent=15 // pred_fallthru
          _
        // Predicated region
        $region21: #{tpu_custom_call.1} parent=15 // pred_check
          %p155 = pneg %p79
        $region22: #{tpu_custom_call.1} parent=15 // pred_check_branch
          %157 = sbr.rel (%p155) target = $region24
        $region23: #{tpu_custom_call.1} parent=15 // pred_region
          %s158 = sand.u32 %s69, 1
          %s159 = scalar_lea.sflag [#allocation6], %s158
          %s160 = sand.u32 %s69, 1
          %s161 = smul.addr %s160, 8
          %s162 = scalar_lea.vmem [#allocation5], %s161
          %s164 = ssub.s32 128, 128
          %165 = vsyncadd %s159, %s164
          %s166 = sadd.s32 %s25, %s24
          %s167 = smul.addr %s166, 128
          %s168 = scalar_lea.hbm %s1, %s167
          %s170 = sshll.u32 %s162, 4
          %s171 = int_to_ptr.vmem [resolvable:$true] %s170
          %173 = dma.hbm_to_vmem [thread:$0]  %s168, 128, %s171, %s159
        $region24: #{tpu_custom_call.1} parent=15 // pred_fallthru
          _
      $region16: #{tpu_custom_call.1} parent=5 // pred_fallthru
        _
      %p174 = scmp.le.s32.totalorder 1, %s17
      %p175 = scmp.lt.s32.totalorder %s17, 3
      %p176 = pnand %p174, %p175
      %p177 = pneg %p176
      // Predicated region
      $region25: #{tpu_custom_call.1} parent=5 // pred_check
        _
      $region26: #{tpu_custom_call.1} parent=5 // pred_check_branch
        %179 = sbr.rel (%p176) target = $region28
      $region27: #{tpu_custom_call.1} parent=5 // pred_region
        %s180 = ssub.s32 %s17, 1
        %s181 = sand.u32 %s44, 1
        %s182 = scalar_lea.sflag [#allocation3], %s181
        %s183 = sand.u32 %s44, 1
        %s184 = smul.addr %s183, 128
        %s185 = scalar_lea.vmem [#allocation2], %s184
        // Predicated region
        $region29: #{tpu_custom_call.1} parent=27 // pred_check
          %p186 = pneg %p57
        $region30: #{tpu_custom_call.1} parent=27 // pred_check_branch
          %188 = sbr.rel (%p186) target = $region32
        $region31: #{tpu_custom_call.1} parent=27 // pred_region
          %189 = dma.done %s182, 2048
        $region32: #{tpu_custom_call.1} parent=27 // pred_fallthru
          _
        %s190 = sand.u32 %s72, 1
        %s191 = scalar_lea.sflag [#allocation6], %s190
        %s192 = sand.u32 %s72, 1
        %s193 = smul.addr %s192, 8
        %s194 = scalar_lea.vmem [#allocation5], %s193
        // Predicated region
        $region33: #{tpu_custom_call.1} parent=27 // pred_check
          %p195 = pneg %p85
        $region34: #{tpu_custom_call.1} parent=27 // pred_check_branch
          %197 = sbr.rel (%p195) target = $region36
        $region35: #{tpu_custom_call.1} parent=27 // pred_region
          %198 = dma.done %s191, 128
        $region36: #{tpu_custom_call.1} parent=27 // pred_fallthru
          _
        %s199 = sand.u32 %s44, 1
        %s200 = scalar_lea.sflag [#allocation3], %s199
        %s201 = sand.u32 %s44, 1
        %s202 = smul.addr %s201, 128
        %s203 = scalar_lea.vmem [#allocation2], %s202
        %p204 = pneg %p57
        %p205 = pneg %p54
        %s206 = sand.u32 %s72, 1
        %s207 = scalar_lea.sflag [#allocation6], %s206
        %s208 = sand.u32 %s72, 1
        %s209 = smul.addr %s208, 8
        %s210 = scalar_lea.vmem [#allocation5], %s209
        %p211 = pneg %p85
        %p212 = pneg %p82
        %p213 = pneg %p113
        %p214 = pneg %p110
        %s215 = sand.u32 %s100, 1
        %s216 = scalar_lea.sflag [#allocation4], %s215
        %s217 = sand.u32 %s100, 1
        %s218 = smul.addr %s217, 8
        %s219 = scalar_lea.vmem [#allocation7], %s218
        %s220 = smul.u32 4, %s27
        %v221 = vld [vmem:[%s194] sm:$0xff]
        %v222 = vunpack.c.0.s8 %v221
        %v223 = vunpack.c.1.s8 %v221
        %v224 = vunpack.c.2.s8 %v221
        %v225 = vunpack.c.3.s8 %v221
        %vm226 = vcmp.ge.s32.totalorder %v222, 0
        %vm227 = vcmp.ge.s32.totalorder %v223, 0
        %vm228 = vcmp.ge.s32.totalorder %v224, 0
        %vm229 = vcmp.ge.s32.totalorder %v225, 0
        %v230 = vsel %vm226, 1, 0
        %v231 = vsel %vm227, 1, 0
        %v232 = vsel %vm228, 1, 0
        %v233 = vsel %vm229, 1, 0
        %v234 = vcvt.s32.f32 %v230
        %v235 = vcvt.s32.f32 %v231
        %v236 = vcvt.s32.f32 %v232
        %v237 = vcvt.s32.f32 %v233
        %v238 = vld [vmem:[%s185] sm:$0xff]
        %v239 = vld [vmem:[%s185 + $0x8] sm:$0xff]
        %v240 = vld [vmem:[%s185 + $0x10] sm:$0xff]
        %v241 = vld [vmem:[%s185 + $0x18] sm:$0xff]
        %s242 = scalar_lea.vmem %s185, 32 [#allocation2]
        %v243 = vld [vmem:[%s242] sm:$0xff]
        %v244 = vld [vmem:[%s242 + $0x8] sm:$0xff]
        %v245 = vld [vmem:[%s242 + $0x10] sm:$0xff]
        %v246 = vld [vmem:[%s242 + $0x18] sm:$0xff]
        %v247 = vmax.f32 %v238, %v243
        %v248 = vmax.f32 %v239, %v244
        %v249 = vmax.f32 %v240, %v245
        %v250 = vmax.f32 %v241, %v246
        %s251 = scalar_lea.vmem %s185, 64 [#allocation2]
        %v252 = vld [vmem:[%s251] sm:$0xff]
        %v253 = vld [vmem:[%s251 + $0x8] sm:$0xff]
        %v254 = vld [vmem:[%s251 + $0x10] sm:$0xff]
        %v255 = vld [vmem:[%s251 + $0x18] sm:$0xff]
        %v256 = vmax.f32 %v247, %v252
        %v257 = vmax.f32 %v248, %v253
        %v258 = vmax.f32 %v249, %v254
        %v259 = vmax.f32 %v250, %v255
        %s260 = scalar_lea.vmem %s185, 96 [#allocation2]
        %v261 = vld [vmem:[%s260] sm:$0xff]
        %v262 = vld [vmem:[%s260 + $0x8] sm:$0xff]
        %v263 = vld [vmem:[%s260 + $0x10] sm:$0xff]
        %v264 = vld [vmem:[%s260 + $0x18] sm:$0xff]
        %v265 = vmax.f32 %v256, %v261
        %v266 = vmax.f32 %v257, %v262
        %v267 = vmax.f32 %v258, %v263
        %v268 = vmax.f32 %v259, %v264
        %v269 = vsub.f32 %v238, %v265
        %v270 = vsub.f32 %v239, %v266
        %v271 = vsub.f32 %v240, %v267
        %v272 = vsub.f32 %v241, %v268
        %v273 = vmul.f32 %v269, 1.442695
        %v274 = vpow.pop %v273
        %v275 = vmul.f32 %v270, 1.442695
        %v276 = vpow.pop %v275
        %v277 = vmul.f32 %v271, 1.442695
        %v278 = vpow.pop %v277
        %v279 = vmul.f32 %v272, 1.442695
        %v280 = vpow.pop %v279
        %v281 = vsub.f32 %v243, %v265
        %v282 = vsub.f32 %v244, %v266
        %v283 = vsub.f32 %v245, %v267
        %v284 = vsub.f32 %v246, %v268
        %v285 = vmul.f32 %v281, 1.442695
        %v286 = vpow.pop %v285
        %v287 = vmul.f32 %v282, 1.442695
        %v288 = vpow.pop %v287
        %v289 = vmul.f32 %v283, 1.442695
        %v290 = vpow.pop %v289
        %v291 = vmul.f32 %v284, 1.442695
        %v292 = vpow.pop %v291
        %v293 = vsub.f32 %v252, %v265
        %v294 = vsub.f32 %v253, %v266
        %v295 = vsub.f32 %v254, %v267
        %v296 = vsub.f32 %v255, %v268
        %v297 = vmul.f32 %v293, 1.442695
        %v298 = vpow.pop %v297
        %v299 = vmul.f32 %v294, 1.442695
        %v300 = vpow.pop %v299
        %v301 = vmul.f32 %v295, 1.442695
        %v302 = vpow.pop %v301
        %v303 = vmul.f32 %v296, 1.442695
        %v304 = vpow.pop %v303
        %v305 = vsub.f32 %v261, %v265
        %v306 = vsub.f32 %v262, %v266
        %v307 = vsub.f32 %v263, %v267
        %v308 = vsub.f32 %v264, %v268
        %v309 = vmul.f32 %v305, 1.442695
        %v310 = vpow.pop %v309
        %v311 = vmul.f32 %v306, 1.442695
        %v312 = vpow.pop %v311
        %v313 = vmul.f32 %v307, 1.442695
        %v314 = vpow.pop %v313
        %v315 = vmul.f32 %v308, 1.442695
        %v316 = vpow.pop %v315
        %v317 = vadd.f32 %v274, %v286
        %v318 = vadd.f32 %v276, %v288
        %v319 = vadd.f32 %v278, %v290
        %v320 = vadd.f32 %v280, %v292
        %v321 = vadd.f32 %v317, %v298
        %v322 = vadd.f32 %v318, %v300
        %v323 = vadd.f32 %v319, %v302
        %v324 = vadd.f32 %v320, %v304
        %v325 = vadd.f32 %v321, %v310
        %v326 = vadd.f32 %v322, %v312
        %v327 = vadd.f32 %v323, %v314
        %v328 = vadd.f32 %v324, %v316
        %v329 = vrcp.pop %v325
        %v330 = vrcp.pop %v326
        %v331 = vrcp.pop %v327
        %v332 = vrcp.pop %v328
        %v333 = vmul.f32 %v325, %v329
        %v334 = vmul.f32 %v326, %v330
        %v335 = vmul.f32 %v327, %v331
        %v336 = vmul.f32 %v328, %v332
        %v337 = vsub.f32 2.0, %v333
        %v338 = vsub.f32 2.0, %v334
        %v339 = vsub.f32 2.0, %v335
        %v340 = vsub.f32 2.0, %v336
        %v341 = vmul.f32 %v329, %v337
        %v342 = vmul.f32 %v330, %v338
        %v343 = vmul.f32 %v331, %v339
        %v344 = vmul.f32 %v332, %v340
        %v345 = vmul.f32 %v341, %v234
        %v346 = vmul.f32 %v342, %v235
        %v347 = vmul.f32 %v343, %v236
        %v348 = vmul.f32 %v344, %v237
        %v349 = vmul.f32 %v274, %v345
        %v350 = vmul.f32 %v276, %v346
        %v351 = vmul.f32 %v278, %v347
        %v352 = vmul.f32 %v280, %v348
        %vm353 = vcmp.eq.s32.totalorder %v222, 0
        %vm354 = vcmp.eq.s32.totalorder %v223, 0
        %vm355 = vcmp.eq.s32.totalorder %v224, 0
        %vm356 = vcmp.eq.s32.totalorder %v225, 0
        %v357 = vsel %vm353, %v349, 0.0
        %v358 = vsel %vm354, %v350, 0.0
        %v359 = vsel %vm355, %v351, 0.0
        %v360 = vsel %vm356, %v352, 0.0
        %v361 = vsel %vm353, 1.0, 0.0
        %v362 = vsel %vm354, 1.0, 0.0
        %v363 = vsel %vm355, 1.0, 0.0
        %v364 = vsel %vm356, 1.0, 0.0
        %v365 = vadd.f32 %v349, %v361
        %v366 = vadd.f32 %v350, %v362
        %v367 = vadd.f32 %v351, %v363
        %v368 = vadd.f32 %v352, %v364
        %v369 = vadd.f32 %v357, %v358
        %v370 = vadd.f32 %v369, %v359
        %v371 = vadd.f32 %v370, %v360
        %v372 = vadd.f32 %v365, %v366
        %v373 = vadd.f32 %v372, %v367
        %v374 = vadd.f32 %v373, %v368
        %v375 = vrot.slane %v371, 4
        %v376 = vadd.f32 %v371, %v375
        %v377 = vrot.slane %v376, 2
        %v378 = vadd.f32 %v376, %v377
        %v379 = vrot.slane %v378, 1
        %v380 = vadd.f32 %v378, %v379
        %v381 = vrot.slane %v374, 4
        %v382 = vadd.f32 %v374, %v381
        %v383 = vrot.slane %v382, 2
        %v384 = vadd.f32 %v382, %v383
        %v385 = vrot.slane %v384, 1
        %v386 = vadd.f32 %v384, %v385
        %v387 = vmul.f32 %v286, %v345
        %v388 = vmul.f32 %v288, %v346
        %v389 = vmul.f32 %v290, %v347
        %v390 = vmul.f32 %v292, %v348
        %vm391 = vcmp.eq.s32.totalorder %v222, 1
        %vm392 = vcmp.eq.s32.totalorder %v223, 1
        %vm393 = vcmp.eq.s32.totalorder %v224, 1
        %vm394 = vcmp.eq.s32.totalorder %v225, 1
        %v395 = vsel %vm391, %v387, 0.0
        %v396 = vsel %vm392, %v388, 0.0
        %v397 = vsel %vm393, %v389, 0.0
        %v398 = vsel %vm394, %v390, 0.0
        %v399 = vsel %vm391, 1.0, 0.0
        %v400 = vsel %vm392, 1.0, 0.0
        %v401 = vsel %vm393, 1.0, 0.0
        %v402 = vsel %vm394, 1.0, 0.0
        %v403 = vadd.f32 %v387, %v399
        %v404 = vadd.f32 %v388, %v400
        %v405 = vadd.f32 %v389, %v401
        %v406 = vadd.f32 %v390, %v402
        %v407 = vadd.f32 %v395, %v396
        %v408 = vadd.f32 %v407, %v397
        %v409 = vadd.f32 %v408, %v398
        %v410 = vadd.f32 %v403, %v404
        %v411 = vadd.f32 %v410, %v405
        %v412 = vadd.f32 %v411, %v406
        %v413 = vrot.slane %v409, 4
        %v414 = vadd.f32 %v409, %v413
        %v415 = vrot.slane %v414, 2
        %v416 = vadd.f32 %v414, %v415
        %v417 = vrot.slane %v416, 1
        %v418 = vadd.f32 %v416, %v417
        %v419 = vrot.slane %v412, 4
        %v420 = vadd.f32 %v412, %v419
        %v421 = vrot.slane %v420, 2
        %v422 = vadd.f32 %v420, %v421
        %v423 = vrot.slane %v422, 1
        %v424 = vadd.f32 %v422, %v423
        %v425 = vmul.f32 %v298, %v345
        %v426 = vmul.f32 %v300, %v346
        %v427 = vmul.f32 %v302, %v347
        %v428 = vmul.f32 %v304, %v348
        %vm429 = vcmp.eq.s32.totalorder %v222, 2
        %vm430 = vcmp.eq.s32.totalorder %v223, 2
        %vm431 = vcmp.eq.s32.totalorder %v224, 2
        %vm432 = vcmp.eq.s32.totalorder %v225, 2
        %v433 = vsel %vm429, %v425, 0.0
        %v434 = vsel %vm430, %v426, 0.0
        %v435 = vsel %vm431, %v427, 0.0
        %v436 = vsel %vm432, %v428, 0.0
        %v437 = vsel %vm429, 1.0, 0.0
        %v438 = vsel %vm430, 1.0, 0.0
        %v439 = vsel %vm431, 1.0, 0.0
        %v440 = vsel %vm432, 1.0, 0.0
        %v441 = vadd.f32 %v425, %v437
        %v442 = vadd.f32 %v426, %v438
        %v443 = vadd.f32 %v427, %v439
        %v444 = vadd.f32 %v428, %v440
        %v445 = vadd.f32 %v433, %v434
        %v446 = vadd.f32 %v445, %v435
        %v447 = vadd.f32 %v446, %v436
        %v448 = vadd.f32 %v441, %v442
        %v449 = vadd.f32 %v448, %v443
        %v450 = vadd.f32 %v449, %v444
        %v451 = vrot.slane %v447, 4
        %v452 = vadd.f32 %v447, %v451
        %v453 = vrot.slane %v452, 2
        %v454 = vadd.f32 %v452, %v453
        %v455 = vrot.slane %v454, 1
        %v456 = vadd.f32 %v454, %v455
        %v457 = vrot.slane %v450, 4
        %v458 = vadd.f32 %v450, %v457
        %v459 = vrot.slane %v458, 2
        %v460 = vadd.f32 %v458, %v459
        %v461 = vrot.slane %v460, 1
        %v462 = vadd.f32 %v460, %v461
        %v463 = vmul.f32 %v310, %v345
        %v464 = vmul.f32 %v312, %v346
        %v465 = vmul.f32 %v314, %v347
        %v466 = vmul.f32 %v316, %v348
        %vm467 = vcmp.eq.s32.totalorder %v222, 3
        %vm468 = vcmp.eq.s32.totalorder %v223, 3
        %vm469 = vcmp.eq.s32.totalorder %v224, 3
        %vm470 = vcmp.eq.s32.totalorder %v225, 3
        %v471 = vsel %vm467, %v463, 0.0
        %v472 = vsel %vm468, %v464, 0.0
        %v473 = vsel %vm469, %v465, 0.0
        %v474 = vsel %vm470, %v466, 0.0
        %v475 = vsel %vm467, 1.0, 0.0
        %v476 = vsel %vm468, 1.0, 0.0
        %v477 = vsel %vm469, 1.0, 0.0
        %v478 = vsel %vm470, 1.0, 0.0
        %v479 = vadd.f32 %v463, %v475
        %v480 = vadd.f32 %v464, %v476
        %v481 = vadd.f32 %v465, %v477
        %v482 = vadd.f32 %v466, %v478
        %v483 = vadd.f32 %v471, %v472
        %v484 = vadd.f32 %v483, %v473
        %v485 = vadd.f32 %v484, %v474
        %v486 = vadd.f32 %v479, %v480
        %v487 = vadd.f32 %v486, %v481
        %v488 = vadd.f32 %v487, %v482
        %v489 = vrot.slane %v485, 4
        %v490 = vadd.f32 %v485, %v489
        %v491 = vrot.slane %v490, 2
        %v492 = vadd.f32 %v490, %v491
        %v493 = vrot.slane %v492, 1
        %v494 = vadd.f32 %v492, %v493
        %v495 = vrot.slane %v488, 4
        %v496 = vadd.f32 %v488, %v495
        %v497 = vrot.slane %v496, 2
        %v498 = vadd.f32 %v496, %v497
        %v499 = vrot.slane %v498, 1
        %v500 = vadd.f32 %v498, %v499
        %vm501 = vcmask 1040384
        %v502 = vsel %vm501, %v380, %v418
        %vm503 = vcmask 1041408
        %v504 = vsel %vm503, %v502, %v456
        %vm505 = vcmask 1042432
        %v506 = vsel %vm505, %v504, %v494
        %vm507 = vcmask 1043456
        %v508 = vsel %vm507, %v506, %v386
        %vm509 = vcmask 1044480
        %v510 = vsel %vm509, %v508, %v424
        %vm511 = vcmask 1045504
        %v512 = vsel %vm511, %v510, %v462
        %vm513 = vcmask 1046528
        %v514 = vsel %vm513, %v512, %v500
        %515 = vst [vmem:[%s219] sm:$0xff] %v514
        %s516 = sand.u32 %s100, 1
        %s517 = scalar_lea.sflag [#allocation4], %s516
        %s518 = sand.u32 %s100, 1
        %s519 = smul.addr %s518, 8
        %s520 = scalar_lea.vmem [#allocation7], %s519
        // Predicated region
        $region37: #{tpu_custom_call.1} parent=27 // pred_check
          %p521 = pneg %p110
        $region38: #{tpu_custom_call.1} parent=27 // pred_check_branch
          %523 = sbr.rel (%p521) target = $region40
        $region39: #{tpu_custom_call.1} parent=27 // pred_region
          %s525 = ssub.s32 128, 128
          %526 = vsyncadd %s517, %s525
          %s527 = sadd.s32 %s27, %s26
          %s528 = smul.addr %s527, 128
          %s529 = scalar_lea.hbm %s2, %s528
          %s531 = sshll.u32 %s520, 4
          %s532 = int_to_ptr.vmem [resolvable:$true] %s531
          %534 = dma.vmem_to_hbm [thread:$0]  %s532, 128, %s529, %s517
        $region40: #{tpu_custom_call.1} parent=27 // pred_fallthru
          _
      $region28: #{tpu_custom_call.1} parent=5 // pred_fallthru
        _
      %p535 = scmp.le.s32.totalorder 2, %s17
      // Predicated region
      $region41: #{tpu_custom_call.1} parent=5 // pred_check
        %p536 = pneg %p535
      $region42: #{tpu_custom_call.1} parent=5 // pred_check_branch
        %538 = sbr.rel (%p536) target = $region44
      $region43: #{tpu_custom_call.1} parent=5 // pred_region
        %s539 = ssub.s32 %s17, 2
        // Predicated region
        $region45: #{tpu_custom_call.1} parent=43 // pred_check
          %p540 = pneg %p116
        $region46: #{tpu_custom_call.1} parent=43 // pred_check_branch
          %542 = sbr.rel (%p540) target = $region48
        $region47: #{tpu_custom_call.1} parent=43 // pred_region
          %s543 = sand.u32 %s101, 1
          %s544 = scalar_lea.sflag [#allocation4], %s543
          %s545 = sand.u32 %s101, 1
          %s546 = smul.addr %s545, 8
          %s547 = scalar_lea.vmem [#allocation7], %s546
          %548 = dma.done %s544, 128
        $region48: #{tpu_custom_call.1} parent=43 // pred_fallthru
          _
      $region44: #{tpu_custom_call.1} parent=5 // pred_fallthru
        _
    $region6: #{tpu_custom_call.1} parent=1 // loop_footer
      %s21 = sadd.s32 1, %s17
    $region7: #{tpu_custom_call.1} parent=1 // loop_footer_branch
      %16 = sbr.rel target = $region3
    $region8: #{tpu_custom_call.1} parent=1 // loop_exit
      _
    %549 = vsyncpa [#allocation3], 1
    %s550 = scalar_lea.sflag [#allocation3], 1
    %551 = vsyncpa %s550, 1
    %552 = vsyncpa [#allocation6], 1
    %s553 = scalar_lea.sflag [#allocation6], 1
    %554 = vsyncpa %s553, 1
    %555 = vsyncpa [#allocation4], 1
    %s556 = scalar_lea.sflag [#allocation4], 1
    %557 = vsyncpa %s556, 1

</llo_original>
